<compile_context>
chip_gen: v7x
topology: tpu7x:2x2x1
jax: 0.10.0
libtpu: 0.0.40
codegen_flags: <defaults>
</compile_context>

<pallas_src>
import jax
import jax.numpy as jnp
from jax.experimental import pallas as pl
from jax.experimental.pallas import tpu as pltpu


def _make_hyper_kernel(n_hidden):
    """Builds the fused LRHyper forward kernel for a fixed MLP depth."""

    def kernel(idx_ref, *refs):
        # refs layout:
        #   emb_ref, ctx_ref,
        #   w0e, w0c, b0,
        #   [w_l, b_l] * n_hidden,
        #   ww, bw, wb_row, bb(SMEM),
        #   out_w, out_b
        emb_ref, ctx_ref = refs[0], refs[1]
        w0e, w0c, b0 = refs[2], refs[3], refs[4]
        hidden = refs[5:5 + 2 * n_hidden]
        ww, bw, wb_row, bb = refs[5 + 2 * n_hidden:5 + 2 * n_hidden + 4]
        out_w, out_b = refs[-2], refs[-1]

        # Embedding lookup: dynamic row slice driven by the SMEM index.
        i = idx_ref[0]
        emb = emb_ref[pl.ds(i, 1), :]          # (1, E)
        ctx = ctx_ref[...]                     # (1, C) with C == E

        # First Linear with the concat folded into a weight split:
        #   cat([emd, ctx]) @ W0^T == emd @ W0e + ctx @ W0c
        h = (jnp.dot(emb, w0e[...], preferred_element_type=jnp.float32)
             + jnp.dot(ctx, w0c[...], preferred_element_type=jnp.float32)
             + b0[...])

        # Hidden ReLU / Linear stack (unrolled at trace time).
        for l in range(n_hidden):
            w = hidden[2 * l]
            b = hidden[2 * l + 1]
            h = jnp.maximum(h, 0.0)
            h = jnp.dot(h, w[...], preferred_element_type=jnp.float32) + b[...]

        # Head 1: fc1.weight -> (1, 2C), lane-dense output.
        out_w[...] = (jnp.dot(h, ww[...], preferred_element_type=jnp.float32)
                      + bw[...]).astype(out_w.dtype)

        # Head 2: fc1.bias (single output). VPU multiply + lane reduction with
        # the weight kept lane-dense as (1, H); scalar bias read from SMEM.
        out_b[...] = (jnp.sum(h * wb_row[...], axis=-1, keepdims=True)
                      + bb[0]).astype(out_b.dtype)

    return kernel


def lr_hyper_forward(params, context_vec, idx):
    """Fused Pallas forward of LRHyper.

    params:
      embeddings : (n_nodes, E) f32
      mlp_weights: list of PyTorch-layout (out, in) weights, len = 1 + n_hidden
      mlp_biases : list of (out,) biases
      fc1_weights: (W (2C, H), b (2C,))
      fc1_bias   : (W (1, H),  b (1,))
    context_vec: (C,) or (1, C); idx: scalar / (1,) int.
    Returns {'fc1.weight': (1, 2C), 'fc1.bias': (1,)}.
    """
    emb_table = params["embeddings"]
    mlp_ws = params["mlp_weights"]
    mlp_bs = params["mlp_biases"]
    fc1w_W, fc1w_b = params["fc1_weights"]
    fc1b_W, fc1b_b = params["fc1_bias"]

    n_nodes, E = emb_table.shape
    C = context_vec.reshape(-1).shape[0]
    H = mlp_ws[0].shape[0]
    n_hidden = len(mlp_ws) - 1
    # torch's expand() in the original forward only works when C == E.
    assert C == E, "LRHyper.forward requires context_vector_size == embedding_dim"

    f32 = jnp.float32
    ctx = context_vec.reshape(1, C).astype(f32)
    idx_arr = jnp.asarray(idx, jnp.int32).reshape(1)

    # Transpose to (in, out) so matmul outputs are lane-dense.
    w0 = mlp_ws[0].T.astype(f32)                  # (E + C, H)
    w0e, w0c = w0[:E], w0[E:]
    b0 = mlp_bs[0].reshape(1, H).astype(f32)

    hidden_args = []
    for l in range(1, n_hidden + 1):
        hidden_args.append(mlp_ws[l].T.astype(f32))            # (H, H)
        hidden_args.append(mlp_bs[l].reshape(1, H).astype(f32))

    ww = fc1w_W.T.astype(f32)                     # (H, 2C)
    bw = fc1w_b.reshape(1, 2 * C).astype(f32)
    wb_row = fc1b_W.reshape(1, H).astype(f32)     # lane-dense (1, H)
    bb = fc1b_b.reshape(1).astype(f32)            # scalar bias -> SMEM

    inputs = [emb_table.astype(f32), ctx, w0e, w0c, b0,
              *hidden_args, ww, bw, wb_row, bb]

    def full_vmem_spec(a):
        # Whole (tiny) array as a single VMEM block; index_map gets
        # (grid_idx, idx_prefetch_ref) -> ignore both.
        return pl.BlockSpec(a.shape, lambda *_: (0, 0))

    in_specs = [full_vmem_spec(a) for a in inputs[:-1]]
    in_specs.append(pl.BlockSpec(memory_space=pltpu.MemorySpace.SMEM))  # bb

    out_w, out_b = pl.pallas_call(
        _make_hyper_kernel(n_hidden),
        out_shape=(jax.ShapeDtypeStruct((1, 2 * C), f32),
                   jax.ShapeDtypeStruct((1, 1), f32)),
        grid_spec=pltpu.PrefetchScalarGridSpec(
            num_scalar_prefetch=1,
            grid=(1,),
            in_specs=in_specs,
            out_specs=(pl.BlockSpec((1, 2 * C), lambda *_: (0, 0)),
                       pl.BlockSpec((1, 1), lambda *_: (0, 0))),
        ),
        compiler_params=pltpu.CompilerParams(
            dimension_semantics=("arbitrary",)),
    )(idx_arr, *inputs)

    # TODO(synk): for very large embedding tables, gather only the needed row
    # via a data-dependent BlockSpec instead of staging the full table in VMEM.
    return {"fc1.weight": out_w, "fc1.bias": out_b.reshape(-1)}


if __name__ == "__main__":
    key = jax.random.PRNGKey(0)

    n_nodes = 4
    embedding_dim = 16
    context_vector_size = 16      # must equal embedding_dim (see forward)
    hnet_hidden_dim = 32
    hnet_n_hidden = 3

    keys = iter(jax.random.split(key, 16))

    def uniform(k, shape, fan_in):
        bound = 1.0 / jnp.sqrt(jnp.float32(fan_in))
        return jax.random.uniform(k, shape, jnp.float32, -bound, bound)

    emb_table = jax.random.normal(next(keys), (n_nodes, embedding_dim), jnp.float32)

    in0 = context_vector_size + embedding_dim
    mlp_ws = [uniform(next(keys), (hnet_hidden_dim, in0), in0)]
    mlp_bs = [uniform(next(keys), (hnet_hidden_dim,), in0)]
    for _ in range(hnet_n_hidden):
        mlp_ws.append(uniform(next(keys), (hnet_hidden_dim, hnet_hidden_dim),
                              hnet_hidden_dim))
        mlp_bs.append(uniform(next(keys), (hnet_hidden_dim,), hnet_hidden_dim))

    fc1w_W = uniform(next(keys), (2 * context_vector_size, hnet_hidden_dim),
                     hnet_hidden_dim)
    fc1w_b = uniform(next(keys), (2 * context_vector_size,), hnet_hidden_dim)
    fc1b_W = uniform(next(keys), (1, hnet_hidden_dim), hnet_hidden_dim)
    fc1b_b = uniform(next(keys), (1,), hnet_hidden_dim)

    context_vec = jax.random.normal(next(keys), (context_vector_size,), jnp.float32)
    idx = jnp.array([2], dtype=jnp.int32)

    params = {
        "embeddings": emb_table,
        "mlp_weights": mlp_ws,
        "mlp_biases": mlp_bs,
        "fc1_weights": (fc1w_W, fc1w_b),
        "fc1_bias": (fc1b_W, fc1b_b),
    }

    out = lr_hyper_forward(params, context_vec, idx)
    out = jax.block_until_ready(out)

    # Pure-JAX reference replicating the PyTorch forward exactly.
    emd = emb_table[idx]                                       # (1, E)
    ctx = context_vec.reshape(1, context_vector_size)
    hnet_vec = jnp.broadcast_to(ctx, (1, embedding_dim))       # expand (C == E)
    h = jnp.concatenate([emd, hnet_vec], axis=1)
    h = h @ mlp_ws[0].T + mlp_bs[0]
    for l in range(1, hnet_n_hidden + 1):
        h = jnp.maximum(h, 0.0)
        h = h @ mlp_ws[l].T + mlp_bs[l]
    ref_w = (h @ fc1w_W.T + fc1w_b).reshape(1, 2 * context_vector_size)
    ref_b = (h @ fc1b_W.T + fc1b_b).reshape(-1)

    assert out["fc1.weight"].shape == (1, 2 * context_vector_size)
    assert out["fc1.bias"].shape == (1,)
    assert jnp.allclose(out["fc1.weight"], ref_w, atol=1e-5, rtol=1e-5)
    assert jnp.allclose(out["fc1.bias"], ref_b, atol=1e-5, rtol=1e-5)

    print("KERNEL_OK")
</pallas_src>

<mosaic_0001>
module attributes {stable_mosaic.version = 11 : i64} {
  func.func @kernel(%arg0: i32, %arg1: memref<1xi32, #tpu.memory_space<smem>>, %arg2: memref<4x16xf32, #tpu.memory_space<vmem>>, %arg3: memref<1x16xf32, #tpu.memory_space<vmem>>, %arg4: memref<16x32xf32, #tpu.memory_space<vmem>>, %arg5: memref<16x32xf32, #tpu.memory_space<vmem>>, %arg6: memref<1x32xf32, #tpu.memory_space<vmem>>, %arg7: memref<32x32xf32, #tpu.memory_space<vmem>>, %arg8: memref<1x32xf32, #tpu.memory_space<vmem>>, %arg9: memref<32x32xf32, #tpu.memory_space<vmem>>, %arg10: memref<1x32xf32, #tpu.memory_space<vmem>>, %arg11: memref<32x32xf32, #tpu.memory_space<vmem>>, %arg12: memref<1x32xf32, #tpu.memory_space<vmem>>, %arg13: memref<32x32xf32, #tpu.memory_space<vmem>>, %arg14: memref<1x32xf32, #tpu.memory_space<vmem>>, %arg15: memref<1x32xf32, #tpu.memory_space<vmem>>, %arg16: memref<1xf32, #tpu.memory_space<smem>>, %arg17: memref<1x32xf32, #tpu.memory_space<vmem>>, %arg18: memref<1x1xf32, #tpu.memory_space<vmem>>) attributes {dimension_semantics = [#tpu.dimension_semantics<arbitrary>], iteration_bounds = array<i64: 1>, scalar_prefetch = 1 : i64, scratch_operands = 0 : i64, tpu.core_type = #tpu.core_type<tc>, window_params = [{pipeline_mode = #tpu.pipeline_mode<synchronous>, transform_indices = @transform_0, window_bounds = array<i64: 4, 16>}, {pipeline_mode = #tpu.pipeline_mode<synchronous>, transform_indices = @transform_1, window_bounds = array<i64: 1, 16>}, {pipeline_mode = #tpu.pipeline_mode<synchronous>, transform_indices = @transform_2, window_bounds = array<i64: 16, 32>}, {pipeline_mode = #tpu.pipeline_mode<synchronous>, transform_indices = @transform_3, window_bounds = array<i64: 16, 32>}, {pipeline_mode = #tpu.pipeline_mode<synchronous>, transform_indices = @transform_4, window_bounds = array<i64: 1, 32>}, {pipeline_mode = #tpu.pipeline_mode<synchronous>, transform_indices = @transform_5, window_bounds = array<i64: 32, 32>}, {pipeline_mode = #tpu.pipeline_mode<synchronous>, transform_indices = @transform_6, window_bounds = array<i64: 1, 32>}, {pipeline_mode = #tpu.pipeline_mode<synchronous>, transform_indices = @transform_7, window_bounds = array<i64: 32, 32>}, {pipeline_mode = #tpu.pipeline_mode<synchronous>, transform_indices = @transform_8, window_bounds = array<i64: 1, 32>}, {pipeline_mode = #tpu.pipeline_mode<synchronous>, transform_indices = @transform_9, window_bounds = array<i64: 32, 32>}, {pipeline_mode = #tpu.pipeline_mode<synchronous>, transform_indices = @transform_10, window_bounds = array<i64: 1, 32>}, {pipeline_mode = #tpu.pipeline_mode<synchronous>, transform_indices = @transform_11, window_bounds = array<i64: 32, 32>}, {pipeline_mode = #tpu.pipeline_mode<synchronous>, transform_indices = @transform_12, window_bounds = array<i64: 1, 32>}, {pipeline_mode = #tpu.pipeline_mode<synchronous>, transform_indices = @transform_13, window_bounds = array<i64: 1, 32>}, {transform_indices = @transform_14, window_bounds = array<i64: 1>}, {pipeline_mode = #tpu.pipeline_mode<synchronous>, transform_indices = @transform_15, window_bounds = array<i64: 1, 32>}, {pipeline_mode = #tpu.pipeline_mode<synchronous>, transform_indices = @transform_16, window_bounds = array<i64: 1, 1>}]} {
    %c0 = arith.constant 0 : index
    %0 = memref.load %arg1[%c0] : memref<1xi32, #tpu.memory_space<smem>>
    %1 = arith.index_cast %0 : i32 to index
    %c0_0 = arith.constant 0 : index
    %2 = vector.load %arg2[%1, %c0_0] : memref<4x16xf32, #tpu.memory_space<vmem>>, vector<1x16xf32>
    %c0_1 = arith.constant 0 : index
    %c0_2 = arith.constant 0 : index
    %3 = vector.load %arg3[%c0_1, %c0_2] : memref<1x16xf32, #tpu.memory_space<vmem>>, vector<1x16xf32>
    %c0_3 = arith.constant 0 : index
    %c0_4 = arith.constant 0 : index
    %4 = vector.load %arg4[%c0_3, %c0_4] : memref<16x32xf32, #tpu.memory_space<vmem>>, vector<16x32xf32>
    %cst = arith.constant dense<0.000000e+00> : vector<1x32xf32>
    %5 = tpu.matmul %2, %4, %cst {dimension_numbers = #tpu.dot_dimension_numbers<[1], [0], [0], [1], [0, 0, 1, 1], [], []>} : vector<1x16xf32>, vector<16x32xf32>, vector<1x32xf32> -> vector<1x32xf32>
    %c0_5 = arith.constant 0 : index
    %c0_6 = arith.constant 0 : index
    %6 = vector.load %arg5[%c0_5, %c0_6] : memref<16x32xf32, #tpu.memory_space<vmem>>, vector<16x32xf32>
    %cst_7 = arith.constant dense<0.000000e+00> : vector<1x32xf32>
    %7 = tpu.matmul %3, %6, %cst_7 {dimension_numbers = #tpu.dot_dimension_numbers<[1], [0], [0], [1], [0, 0, 1, 1], [], []>} : vector<1x16xf32>, vector<16x32xf32>, vector<1x32xf32> -> vector<1x32xf32>
    %8 = arith.addf %5, %7 : vector<1x32xf32>
    %c0_8 = arith.constant 0 : index
    %c0_9 = arith.constant 0 : index
    %9 = vector.load %arg6[%c0_8, %c0_9] : memref<1x32xf32, #tpu.memory_space<vmem>>, vector<1x32xf32>
    %10 = arith.addf %8, %9 : vector<1x32xf32>
    %cst_10 = arith.constant 0.000000e+00 : f32
    %11 = vector.broadcast %cst_10 : f32 to vector<1x32xf32>
    %12 = arith.maximumf %10, %11 : vector<1x32xf32>
    %c0_11 = arith.constant 0 : index
    %c0_12 = arith.constant 0 : index
    %13 = vector.load %arg7[%c0_11, %c0_12] : memref<32x32xf32, #tpu.memory_space<vmem>>, vector<32x32xf32>
    %cst_13 = arith.constant dense<0.000000e+00> : vector<1x32xf32>
    %14 = tpu.matmul %12, %13, %cst_13 {dimension_numbers = #tpu.dot_dimension_numbers<[1], [0], [0], [1], [0, 0, 1, 1], [], []>} : vector<1x32xf32>, vector<32x32xf32>, vector<1x32xf32> -> vector<1x32xf32>
    %c0_14 = arith.constant 0 : index
    %c0_15 = arith.constant 0 : index
    %15 = vector.load %arg8[%c0_14, %c0_15] : memref<1x32xf32, #tpu.memory_space<vmem>>, vector<1x32xf32>
    %16 = arith.addf %14, %15 : vector<1x32xf32>
    %cst_16 = arith.constant 0.000000e+00 : f32
    %17 = vector.broadcast %cst_16 : f32 to vector<1x32xf32>
    %18 = arith.maximumf %16, %17 : vector<1x32xf32>
    %c0_17 = arith.constant 0 : index
    %c0_18 = arith.constant 0 : index
    %19 = vector.load %arg9[%c0_17, %c0_18] : memref<32x32xf32, #tpu.memory_space<vmem>>, vector<32x32xf32>
    %cst_19 = arith.constant dense<0.000000e+00> : vector<1x32xf32>
    %20 = tpu.matmul %18, %19, %cst_19 {dimension_numbers = #tpu.dot_dimension_numbers<[1], [0], [0], [1], [0, 0, 1, 1], [], []>} : vector<1x32xf32>, vector<32x32xf32>, vector<1x32xf32> -> vector<1x32xf32>
    %c0_20 = arith.constant 0 : index
    %c0_21 = arith.constant 0 : index
    %21 = vector.load %arg10[%c0_20, %c0_21] : memref<1x32xf32, #tpu.memory_space<vmem>>, vector<1x32xf32>
    %22 = arith.addf %20, %21 : vector<1x32xf32>
    %cst_22 = arith.constant 0.000000e+00 : f32
    %23 = vector.broadcast %cst_22 : f32 to vector<1x32xf32>
    %24 = arith.maximumf %22, %23 : vector<1x32xf32>
    %c0_23 = arith.constant 0 : index
    %c0_24 = arith.constant 0 : index
    %25 = vector.load %arg11[%c0_23, %c0_24] : memref<32x32xf32, #tpu.memory_space<vmem>>, vector<32x32xf32>
    %cst_25 = arith.constant dense<0.000000e+00> : vector<1x32xf32>
    %26 = tpu.matmul %24, %25, %cst_25 {dimension_numbers = #tpu.dot_dimension_numbers<[1], [0], [0], [1], [0, 0, 1, 1], [], []>} : vector<1x32xf32>, vector<32x32xf32>, vector<1x32xf32> -> vector<1x32xf32>
    %c0_26 = arith.constant 0 : index
    %c0_27 = arith.constant 0 : index
    %27 = vector.load %arg12[%c0_26, %c0_27] : memref<1x32xf32, #tpu.memory_space<vmem>>, vector<1x32xf32>
    %28 = arith.addf %26, %27 : vector<1x32xf32>
    %c0_28 = arith.constant 0 : index
    %c0_29 = arith.constant 0 : index
    %29 = vector.load %arg13[%c0_28, %c0_29] : memref<32x32xf32, #tpu.memory_space<vmem>>, vector<32x32xf32>
    %cst_30 = arith.constant dense<0.000000e+00> : vector<1x32xf32>
    %30 = tpu.matmul %28, %29, %cst_30 {dimension_numbers = #tpu.dot_dimension_numbers<[1], [0], [0], [1], [0, 0, 1, 1], [], []>} : vector<1x32xf32>, vector<32x32xf32>, vector<1x32xf32> -> vector<1x32xf32>
    %c0_31 = arith.constant 0 : index
    %c0_32 = arith.constant 0 : index
    %31 = vector.load %arg14[%c0_31, %c0_32] : memref<1x32xf32, #tpu.memory_space<vmem>>, vector<1x32xf32>
    %32 = arith.addf %30, %31 : vector<1x32xf32>
    %c0_33 = arith.constant 0 : index
    %c0_34 = arith.constant 0 : index
    %33 = vector.load %arg17[%c0_33, %c0_34] : memref<1x32xf32, #tpu.memory_space<vmem>>, vector<1x32xf32>
    tpu.vector_store %arg17[%c0_33, %c0_34], %32 {strides = array<i32>} : memref<1x32xf32, #tpu.memory_space<vmem>>, vector<1x32xf32>,
    %c0_35 = arith.constant 0 : index
    %c0_36 = arith.constant 0 : index
    %34 = vector.load %arg15[%c0_35, %c0_36] : memref<1x32xf32, #tpu.memory_space<vmem>>, vector<1x32xf32>
    %35 = arith.mulf %28, %34 : vector<1x32xf32>
    %cst_37 = arith.constant dense<0.000000e+00> : vector<1xf32>
    %36 = vector.multi_reduction <add>, %35, %cst_37 [1] : vector<1x32xf32> to vector<1xf32>
    %37 = vector.shape_cast %36 : vector<1xf32> to vector<1x1xf32>
    %c0_38 = arith.constant 0 : index
    %38 = memref.load %arg16[%c0_38] : memref<1xf32, #tpu.memory_space<smem>>
    %39 = vector.broadcast %38 : f32 to vector<1x1xf32>
    %40 = arith.addf %37, %39 : vector<1x1xf32>
    %c0_39 = arith.constant 0 : index
    %c0_40 = arith.constant 0 : index
    %41 = vector.load %arg18[%c0_39, %c0_40] : memref<1x1xf32, #tpu.memory_space<vmem>>, vector<1x1xf32>
    tpu.vector_store %arg18[%c0_39, %c0_40], %40 {strides = array<i32>} : memref<1x1xf32, #tpu.memory_space<vmem>>, vector<1x1xf32>,
    return
  }
  func.func @transform_0(%arg0: i32, %arg1: memref<1xi32, #tpu.memory_space<smem>>) -> (i32, i32) {
    %c0_i32 = arith.constant 0 : i32
    %c0_i32_0 = arith.constant 0 : i32
    %c0_i32_1 = arith.constant 0 : i32
    return %c0_i32, %c0_i32_0 : i32, i32
  }
  func.func @transform_1(%arg0: i32, %arg1: memref<1xi32, #tpu.memory_space<smem>>) -> (i32, i32) {
    %c0_i32 = arith.constant 0 : i32
    %c0_i32_0 = arith.constant 0 : i32
    %c0_i32_1 = arith.constant 0 : i32
    return %c0_i32, %c0_i32_0 : i32, i32
  }
  func.func @transform_2(%arg0: i32, %arg1: memref<1xi32, #tpu.memory_space<smem>>) -> (i32, i32) {
    %c0_i32 = arith.constant 0 : i32
    %c0_i32_0 = arith.constant 0 : i32
    %c0_i32_1 = arith.constant 0 : i32
    return %c0_i32, %c0_i32_0 : i32, i32
  }
  func.func @transform_3(%arg0: i32, %arg1: memref<1xi32, #tpu.memory_space<smem>>) -> (i32, i32) {
    %c0_i32 = arith.constant 0 : i32
    %c0_i32_0 = arith.constant 0 : i32
    %c0_i32_1 = arith.constant 0 : i32
    return %c0_i32, %c0_i32_0 : i32, i32
  }
  func.func @transform_4(%arg0: i32, %arg1: memref<1xi32, #tpu.memory_space<smem>>) -> (i32, i32) {
    %c0_i32 = arith.constant 0 : i32
    %c0_i32_0 = arith.constant 0 : i32
    %c0_i32_1 = arith.constant 0 : i32
    return %c0_i32, %c0_i32_0 : i32, i32
  }
  func.func @transform_5(%arg0: i32, %arg1: memref<1xi32, #tpu.memory_space<smem>>) -> (i32, i32) {
    %c0_i32 = arith.constant 0 : i32
    %c0_i32_0 = arith.constant 0 : i32
    %c0_i32_1 = arith.constant 0 : i32
    return %c0_i32, %c0_i32_0 : i32, i32
  }
  func.func @transform_6(%arg0: i32, %arg1: memref<1xi32, #tpu.memory_space<smem>>) -> (i32, i32) {
    %c0_i32 = arith.constant 0 : i32
    %c0_i32_0 = arith.constant 0 : i32
    %c0_i32_1 = arith.constant 0 : i32
    return %c0_i32, %c0_i32_0 : i32, i32
  }
  func.func @transform_7(%arg0: i32, %arg1: memref<1xi32, #tpu.memory_space<smem>>) -> (i32, i32) {
    %c0_i32 = arith.constant 0 : i32
    %c0_i32_0 = arith.constant 0 : i32
    %c0_i32_1 = arith.constant 0 : i32
    return %c0_i32, %c0_i32_0 : i32, i32
  }
  func.func @transform_8(%arg0: i32, %arg1: memref<1xi32, #tpu.memory_space<smem>>) -> (i32, i32) {
    %c0_i32 = arith.constant 0 : i32
    %c0_i32_0 = arith.constant 0 : i32
    %c0_i32_1 = arith.constant 0 : i32
    return %c0_i32, %c0_i32_0 : i32, i32
  }
  func.func @transform_9(%arg0: i32, %arg1: memref<1xi32, #tpu.memory_space<smem>>) -> (i32, i32) {
    %c0_i32 = arith.constant 0 : i32
    %c0_i32_0 = arith.constant 0 : i32
    %c0_i32_1 = arith.constant 0 : i32
    return %c0_i32, %c0_i32_0 : i32, i32
  }
  func.func @transform_10(%arg0: i32, %arg1: memref<1xi32, #tpu.memory_space<smem>>) -> (i32, i32) {
    %c0_i32 = arith.constant 0 : i32
    %c0_i32_0 = arith.constant 0 : i32
    %c0_i32_1 = arith.constant 0 : i32
    return %c0_i32, %c0_i32_0 : i32, i32
  }
  func.func @transform_11(%arg0: i32, %arg1: memref<1xi32, #tpu.memory_space<smem>>) -> (i32, i32) {
    %c0_i32 = arith.constant 0 : i32
    %c0_i32_0 = arith.constant 0 : i32
    %c0_i32_1 = arith.constant 0 : i32
    return %c0_i32, %c0_i32_0 : i32, i32
  }
  func.func @transform_12(%arg0: i32, %arg1: memref<1xi32, #tpu.memory_space<smem>>) -> (i32, i32) {
    %c0_i32 = arith.constant 0 : i32
    %c0_i32_0 = arith.constant 0 : i32
    %c0_i32_1 = arith.constant 0 : i32
    return %c0_i32, %c0_i32_0 : i32, i32
  }
  func.func @transform_13(%arg0: i32, %arg1: memref<1xi32, #tpu.memory_space<smem>>) -> (i32, i32) {
    %c0_i32 = arith.constant 0 : i32
    %c0_i32_0 = arith.constant 0 : i32
    %c0_i32_1 = arith.constant 0 : i32
    return %c0_i32, %c0_i32_0 : i32, i32
  }
  func.func @transform_14(%arg0: i32, %arg1: memref<1xi32, #tpu.memory_space<smem>>) -> i32 {
    %c0_i32 = arith.constant 0 : i32
    %c0_i32_0 = arith.constant 0 : i32
    return %c0_i32 : i32
  }
  func.func @transform_15(%arg0: i32, %arg1: memref<1xi32, #tpu.memory_space<smem>>) -> (i32, i32) {
    %c0_i32 = arith.constant 0 : i32
    %c0_i32_0 = arith.constant 0 : i32
    %c0_i32_1 = arith.constant 0 : i32
    return %c0_i32, %c0_i32_0 : i32, i32
  }
  func.func @transform_16(%arg0: i32, %arg1: memref<1xi32, #tpu.memory_space<smem>>) -> (i32, i32) {
    %c0_i32 = arith.constant 0 : i32
    %c0_i32_0 = arith.constant 0 : i32
    %c0_i32_1 = arith.constant 0 : i32
    return %c0_i32, %c0_i32_0 : i32, i32
  }
}

</mosaic_0001>

<llo_original>
// kernel: tpu_custom_call.1
$region0: #{tpu_custom_call.1}
  #allocation0 [shape = 'u32[]', space=smem, size = 0x4, offset = 0x4, fixed_abs, tag = 'smem constant byte address 0x4 - core index']
  #allocation1 [shape = 'u32[144,128]{1,0:T(1,128)}', space=vmem, size = 0x12000, scoped, tag = 'internal scratch']
  #allocation2 [shape = 's32[1]{0}', space=sflag, size = 0x4, scoped, tag = 'scoped memory for tpu_custom_call.1']
  #allocation3 [shape = 's32[1]{0:T(128)S(6)}', space=smem, size = 0x200, scoped, tag = 'prefetched SMEM operand 0']
  #allocation4 [shape = 'f32[1]{0:T(128)S(6)}', space=smem, size = 0x200, scoped, tag = 'scoped memory for tpu_custom_call.1']
  %s0 = inlined_call_operand.<no memory space> [shape: s32[1], index: 0, kind: input, shape index: {}]
  %s1 = inlined_call_operand.hbm [shape: f32[4,16], index: 1, kind: input, shape index: {}]
  %s2 = inlined_call_operand.vmem [shape: f32[1,16], index: 2, kind: input, shape index: {}]
  %s3 = inlined_call_operand.hbm [shape: f32[16,32], index: 3, kind: input, shape index: {}]
  %s4 = inlined_call_operand.hbm [shape: f32[16,32], index: 4, kind: input, shape index: {}]
  %s5 = inlined_call_operand.vmem [shape: f32[1,32], index: 5, kind: input, shape index: {}]
  %s6 = inlined_call_operand.hbm [shape: f32[32,32], index: 6, kind: input, shape index: {}]
  %s7 = inlined_call_operand.hbm [shape: f32[1,32], index: 7, kind: input, shape index: {}]
  %s8 = inlined_call_operand.vmem [shape: f32[32,32], index: 8, kind: input, shape index: {}]
  %s9 = inlined_call_operand.vmem [shape: f32[1,32], index: 9, kind: input, shape index: {}]
  %s10 = inlined_call_operand.hbm [shape: f32[32,32], index: 10, kind: input, shape index: {}]
  %s11 = inlined_call_operand.vmem [shape: f32[1,32], index: 11, kind: input, shape index: {}]
  %s12 = inlined_call_operand.hbm [shape: f32[32,32], index: 12, kind: input, shape index: {}]
  %s13 = inlined_call_operand.vmem [shape: f32[1,32], index: 13, kind: input, shape index: {}]
  %s14 = inlined_call_operand.vmem [shape: f32[1,32], index: 14, kind: input, shape index: {}]
  %s15 = inlined_call_operand.<no memory space> [shape: f32[1], index: 15, kind: input, shape index: {}]
  %s16 = inlined_call_operand.hbm [shape: f32[1,32], index: 16, kind: output, shape index: {0}]
  %s17 = inlined_call_operand.hbm [shape: f32[1,1], index: 17, kind: output, shape index: {1}]
  %18 = xla_tuple %s16, %s17
  %s19 = sld [smem:[#allocation0]]
  $region106: #{tpu_custom_call.1} parent=0
    _
  %s21 = ssub.s32 1, %s19
  %s22 = scalar_select 0, %s21, %s19
  %23 = sst [smem:[#allocation3]] %s0
  %24 = sst [smem:[#allocation4]] %s15
  $region1: #{tpu_custom_call.1} parent=0
    #allocation5 [shape = 'u8[2048]{0}', space=vmem, size = 0x800, scoped, tag = 'input window, operand 1, single buffered']
    #allocation6 [shape = 's32[1]{0}', space=sflag, size = 0x4, scoped, tag = 'scoped memory for tpu_custom_call.1']
    #allocation7 [shape = 's32[1]{0}', space=sflag, size = 0x4, scoped, tag = 'scoped memory for tpu_custom_call.1']
    #allocation8 [shape = 'u8[8192]{0}', space=vmem, size = 0x2000, scoped, tag = 'input window, operand 3, single buffered']
    #allocation9 [shape = 's32[1]{0}', space=sflag, size = 0x4, scoped, tag = 'scoped memory for tpu_custom_call.1']
    #allocation10 [shape = 'u8[8192]{0}', space=vmem, size = 0x2000, scoped, tag = 'input window, operand 4, single buffered']
    #allocation11 [shape = 'u8[16384]{0}', space=vmem, size = 0x4000, scoped, tag = 'input window, operand 6, single buffered']
    #allocation12 [shape = 's32[1]{0}', space=sflag, size = 0x4, scoped, tag = 'scoped memory for tpu_custom_call.1']
    #allocation13 [shape = 'u8[512]{0}', space=vmem, size = 0x400, scoped, tag = 'input window, operand 7, single buffered']
    #allocation14 [shape = 'u8[16384]{0}', space=vmem, size = 0x4000, scoped, tag = 'input window, operand 10, single buffered']
    #allocation15 [shape = 's32[1]{0}', space=sflag, size = 0x4, scoped, tag = 'scoped memory for tpu_custom_call.1']
    #allocation16 [shape = 'u8[16384]{0}', space=vmem, size = 0x4000, scoped, tag = 'input window, operand 12, single buffered']
    #allocation17 [shape = 'u8[512]{0}', space=vmem, size = 0x400, scoped, tag = 'output window, operand 0, single buffered']
    #allocation18 [shape = 'u8[512]{0}', space=vmem, size = 0x400, scoped, tag = 'output window, operand 1, single buffered']
    #allocation19 [shape = 's32[1]{0}', space=sflag, size = 0x4, scoped, tag = 'scoped memory for tpu_custom_call.1']
    %25 = vsyncpa [#allocation6], 0
    %26 = vsyncpa [#allocation9], 0
    %27 = vsyncpa [#allocation12], 0
    %28 = vsyncpa [#allocation15], 0
    %29 = vsyncpa [#allocation7], 0
    %30 = vsyncpa [#allocation19], 0
    // Predicated region
    $region2: #{tpu_custom_call.1} parent=1 // pred_check
      _
    $region3: #{tpu_custom_call.1} parent=1 // pred_check_branch
      %32 = sbr.rel (0) target = $region5
    $region4: #{tpu_custom_call.1} parent=1 // pred_region
      %s34 = ssub.s32 64, 64
      %35 = vsyncadd [#allocation6], %s34
      %s37 = sshll.u32 [#allocation5], 4
      %s38 = int_to_ptr.vmem [resolvable:$true] %s37
      %40 = dma.hbm_to_vmem [thread:$0]  %s1, 64, %s38, [#allocation6]
    $region5: #{tpu_custom_call.1} parent=1 // pred_fallthru
      _
    // Predicated region
    $region6: #{tpu_custom_call.1} parent=1 // pred_check
      _
    $region7: #{tpu_custom_call.1} parent=1 // pred_check_branch
      %42 = sbr.rel (0) target = $region9
    $region8: #{tpu_custom_call.1} parent=1 // pred_region
      _
    $region9: #{tpu_custom_call.1} parent=1 // pred_fallthru
      _
    // Predicated region
    $region10: #{tpu_custom_call.1} parent=1 // pred_check
      _
    $region11: #{tpu_custom_call.1} parent=1 // pred_check_branch
      %44 = sbr.rel (0) target = $region13
    $region12: #{tpu_custom_call.1} parent=1 // pred_region
      %s46 = ssub.s32 256, 256
      %47 = vsyncadd [#allocation9], %s46
      %s48 = sshll.u32 [#allocation8], 4
      %s49 = int_to_ptr.vmem [resolvable:$true] %s48
      %54 = dma.hbm_to_vmem [thread:$0]  %s3, 256, %s49, [#allocation9], 128, 128, 8
    $region13: #{tpu_custom_call.1} parent=1 // pred_fallthru
      _
    // Predicated region
    $region14: #{tpu_custom_call.1} parent=1 // pred_check
      _
    $region15: #{tpu_custom_call.1} parent=1 // pred_check_branch
      %56 = sbr.rel (0) target = $region17
    $region16: #{tpu_custom_call.1} parent=1 // pred_region
      %s58 = ssub.s32 256, 256
      %59 = vsyncadd [#allocation9], %s58
      %s60 = sshll.u32 [#allocation10], 4
      %s61 = int_to_ptr.vmem [resolvable:$true] %s60
      %66 = dma.hbm_to_vmem [thread:$0]  %s4, 256, %s61, [#allocation9], 128, 128, 8
    $region17: #{tpu_custom_call.1} parent=1 // pred_fallthru
      _
    // Predicated region
    $region18: #{tpu_custom_call.1} parent=1 // pred_check
      _
    $region19: #{tpu_custom_call.1} parent=1 // pred_check_branch
      %68 = sbr.rel (0) target = $region21
    $region20: #{tpu_custom_call.1} parent=1 // pred_region
      _
    $region21: #{tpu_custom_call.1} parent=1 // pred_fallthru
      _
    // Predicated region
    $region22: #{tpu_custom_call.1} parent=1 // pred_check
      _
    $region23: #{tpu_custom_call.1} parent=1 // pred_check_branch
      %70 = sbr.rel (0) target = $region25
    $region24: #{tpu_custom_call.1} parent=1 // pred_region
      %s72 = ssub.s32 512, 512
      %73 = vsyncadd [#allocation12], %s72
      %s74 = sshll.u32 [#allocation11], 4
      %s75 = int_to_ptr.vmem [resolvable:$true] %s74
      %80 = dma.hbm_to_vmem [thread:$0]  %s6, 512, %s75, [#allocation12], 128, 128, 8
    $region25: #{tpu_custom_call.1} parent=1 // pred_fallthru
      _
    // Predicated region
    $region26: #{tpu_custom_call.1} parent=1 // pred_check
      _
    $region27: #{tpu_custom_call.1} parent=1 // pred_check_branch
      %82 = sbr.rel (0) target = $region29
    $region28: #{tpu_custom_call.1} parent=1 // pred_region
      %s84 = ssub.s32 16, 16
      %85 = vsyncadd [#allocation12], %s84
      %s87 = sshll.u32 [#allocation13], 4
      %s88 = int_to_ptr.vmem [resolvable:$true] %s87
      %90 = dma.hbm_to_vmem [thread:$0]  %s7, 16, %s88, [#allocation12]
    $region29: #{tpu_custom_call.1} parent=1 // pred_fallthru
      _
    // Predicated region
    $region30: #{tpu_custom_call.1} parent=1 // pred_check
      _
    $region31: #{tpu_custom_call.1} parent=1 // pred_check_branch
      %92 = sbr.rel (0) target = $region33
    $region32: #{tpu_custom_call.1} parent=1 // pred_region
      _
    $region33: #{tpu_custom_call.1} parent=1 // pred_fallthru
      _
    // Predicated region
    $region34: #{tpu_custom_call.1} parent=1 // pred_check
      _
    $region35: #{tpu_custom_call.1} parent=1 // pred_check_branch
      %94 = sbr.rel (0) target = $region37
    $region36: #{tpu_custom_call.1} parent=1 // pred_region
      _
    $region37: #{tpu_custom_call.1} parent=1 // pred_fallthru
      _
    // Predicated region
    $region38: #{tpu_custom_call.1} parent=1 // pred_check
      _
    $region39: #{tpu_custom_call.1} parent=1 // pred_check_branch
      %96 = sbr.rel (0) target = $region41
    $region40: #{tpu_custom_call.1} parent=1 // pred_region
      %s98 = ssub.s32 512, 512
      %99 = vsyncadd [#allocation15], %s98
      %s100 = sshll.u32 [#allocation14], 4
      %s101 = int_to_ptr.vmem [resolvable:$true] %s100
      %106 = dma.hbm_to_vmem [thread:$0]  %s10, 512, %s101, [#allocation15], 128, 128, 8
    $region41: #{tpu_custom_call.1} parent=1 // pred_fallthru
      _
    // Predicated region
    $region42: #{tpu_custom_call.1} parent=1 // pred_check
      _
    $region43: #{tpu_custom_call.1} parent=1 // pred_check_branch
      %108 = sbr.rel (0) target = $region45
    $region44: #{tpu_custom_call.1} parent=1 // pred_region
      _
    $region45: #{tpu_custom_call.1} parent=1 // pred_fallthru
      _
    // Predicated region
    $region46: #{tpu_custom_call.1} parent=1 // pred_check
      _
    $region47: #{tpu_custom_call.1} parent=1 // pred_check_branch
      %110 = sbr.rel (0) target = $region49
    $region48: #{tpu_custom_call.1} parent=1 // pred_region
      %s112 = ssub.s32 512, 512
      %113 = vsyncadd [#allocation15], %s112
      %s114 = sshll.u32 [#allocation16], 4
      %s115 = int_to_ptr.vmem [resolvable:$true] %s114
      %120 = dma.hbm_to_vmem [thread:$0]  %s12, 512, %s115, [#allocation15], 128, 128, 8
    $region49: #{tpu_custom_call.1} parent=1 // pred_fallthru
      _
    // Predicated region
    $region50: #{tpu_custom_call.1} parent=1 // pred_check
      _
    $region51: #{tpu_custom_call.1} parent=1 // pred_check_branch
      %122 = sbr.rel (0) target = $region53
    $region52: #{tpu_custom_call.1} parent=1 // pred_region
      _
    $region53: #{tpu_custom_call.1} parent=1 // pred_fallthru
      _
    // Predicated region
    $region54: #{tpu_custom_call.1} parent=1 // pred_check
      _
    $region55: #{tpu_custom_call.1} parent=1 // pred_check_branch
      %124 = sbr.rel (0) target = $region57
    $region56: #{tpu_custom_call.1} parent=1 // pred_region
      _
    $region57: #{tpu_custom_call.1} parent=1 // pred_fallthru
      _
    // Predicated region
    $region58: #{tpu_custom_call.1} parent=1 // pred_check
      _
    $region59: #{tpu_custom_call.1} parent=1 // pred_check_branch
      %126 = sbr.rel (0) target = $region61
    $region60: #{tpu_custom_call.1} parent=1 // pred_region
      _
    $region61: #{tpu_custom_call.1} parent=1 // pred_fallthru
      _
    // Predicated region
    $region62: #{tpu_custom_call.1} parent=1 // pred_check
      _
    $region63: #{tpu_custom_call.1} parent=1 // pred_check_branch
      %128 = sbr.rel (0) target = $region65
    $region64: #{tpu_custom_call.1} parent=1 // pred_region
      %129 = dma.done [#allocation6], 64
    $region65: #{tpu_custom_call.1} parent=1 // pred_fallthru
      _
    // Predicated region
    $region66: #{tpu_custom_call.1} parent=1 // pred_check
      _
    $region67: #{tpu_custom_call.1} parent=1 // pred_check_branch
      %131 = sbr.rel (0) target = $region69
    $region68: #{tpu_custom_call.1} parent=1 // pred_region
      %132 = dma.done [#allocation9], 256
    $region69: #{tpu_custom_call.1} parent=1 // pred_fallthru
      _
    // Predicated region
    $region70: #{tpu_custom_call.1} parent=1 // pred_check
      _
    $region71: #{tpu_custom_call.1} parent=1 // pred_check_branch
      %134 = sbr.rel (0) target = $region73
    $region72: #{tpu_custom_call.1} parent=1 // pred_region
      %135 = dma.done [#allocation9], 256
    $region73: #{tpu_custom_call.1} parent=1 // pred_fallthru
      _
    // Predicated region
    $region74: #{tpu_custom_call.1} parent=1 // pred_check
      _
    $region75: #{tpu_custom_call.1} parent=1 // pred_check_branch
      %137 = sbr.rel (0) target = $region77
    $region76: #{tpu_custom_call.1} parent=1 // pred_region
      %138 = dma.done [#allocation12], 512
    $region77: #{tpu_custom_call.1} parent=1 // pred_fallthru
      _
    // Predicated region
    $region78: #{tpu_custom_call.1} parent=1 // pred_check
      _
    $region79: #{tpu_custom_call.1} parent=1 // pred_check_branch
      %140 = sbr.rel (0) target = $region81
    $region80: #{tpu_custom_call.1} parent=1 // pred_region
      %141 = dma.done [#allocation12], 16
    $region81: #{tpu_custom_call.1} parent=1 // pred_fallthru
      _
    // Predicated region
    $region82: #{tpu_custom_call.1} parent=1 // pred_check
      _
    $region83: #{tpu_custom_call.1} parent=1 // pred_check_branch
      %143 = sbr.rel (0) target = $region85
    $region84: #{tpu_custom_call.1} parent=1 // pred_region
      %144 = dma.done [#allocation15], 512
    $region85: #{tpu_custom_call.1} parent=1 // pred_fallthru
      _
    // Predicated region
    $region86: #{tpu_custom_call.1} parent=1 // pred_check
      _
    $region87: #{tpu_custom_call.1} parent=1 // pred_check_branch
      %146 = sbr.rel (0) target = $region89
    $region88: #{tpu_custom_call.1} parent=1 // pred_region
      %147 = dma.done [#allocation15], 512
    $region89: #{tpu_custom_call.1} parent=1 // pred_fallthru
      _
    %s148 = sld [smem:[#allocation3]]
    %s149 = scalar_lea.vmem [#allocation5], %s148
    %v150 = vld [vmem:[%s149] sm:$0x1]
    %v151 = vld [vmem:[%s2] sm:$0x1]
    %v152 = vld [vmem:[#allocation8] sm:$0xff]
    %v153 = vld [vmem:[#allocation8 + $0x8] sm:$0xff]
    %v154 = vld [vmem:[#allocation10] sm:$0xff]
    %v155 = vld [vmem:[#allocation10 + $0x8] sm:$0xff]
    %vm156 = vcmask 130048
    %v158 = vsel %vm156, %v151, 0
    %160 = vmatprep.subr.mxu0 0.0
    %161 = vmatpush1.msra.mxu0 %v154
    %162 = vmatprep.subr.mxu0 0.0
    %163 = vmatpush1.msra.mxu0 %v155
    %164 = vmatprep.subr.mxu0 0.0
    %165 = vmatpush1.msra.mxu0 0.0
    %166 = vmatprep.subr.mxu0 0.0
    %167 = vmatpush1.msra.mxu0 0.0
    %168 = vmatprep.subr.mxu0 0.0
    %169 = vmatpush1.msra.mxu0 0.0
    %170 = vmatprep.subr.mxu0 0.0
    %171 = vmatpush1.msra.mxu0 0.0
    %172 = vmatprep.subr.mxu0 0.0
    %173 = vmatpush1.msra.mxu0 0.0
    %174 = vmatprep.subr.mxu0 0.0
    %175 = vmatpush1.msra.mxu0 0.0
    %176 = vmatprep.subr.mxu0 0.0
    %177 = vmatpush1.msra.mxu0 0.0
    %178 = vmatprep.subr.mxu0 0.0
    %179 = vmatpush1.msra.mxu0 0.0
    %180 = vmatprep.subr.mxu0 0.0
    %181 = vmatpush1.msra.mxu0 0.0
    %182 = vmatprep.subr.mxu0 0.0
    %183 = vmatpush1.msra.mxu0 0.0
    %184 = vmatprep.subr.mxu0 0.0
    %185 = vmatpush1.msra.mxu0 0.0
    %186 = vmatprep.subr.mxu0 0.0
    %187 = vmatpush1.msra.mxu0 0.0
    %188 = vmatprep.subr.mxu0 0.0
    %189 = vmatpush1.msra.mxu0 0.0
    %190 = vmatprep.subr.mxu0 0.0
    %191 = vmatpush1.msra.mxu0 0.0
    %192 = vmatprep.subr.mxu0 0.0
    %193 = vmatpush1.msra.mxu0 0.0
    %194 = vmatprep.subr.mxu0 0.0
    %195 = vmatpush1.msra.mxu0 0.0
    %196 = vmatprep.subr.mxu0 0.0
    %197 = vmatpush1.msra.mxu0 0.0
    %198 = vmatprep.subr.mxu0 0.0
    %199 = vmatpush1.msra.mxu0 0.0
    %200 = vmatprep.subr.mxu0 0.0
    %201 = vmatpush1.msra.mxu0 0.0
    %202 = vmatprep.subr.mxu0 0.0
    %203 = vmatpush1.msra.mxu0 0.0
    %204 = vmatprep.subr.mxu0 0.0
    %205 = vmatpush1.msra.mxu0 0.0
    %206 = vmatprep.subr.mxu0 0.0
    %207 = vmatpush1.msra.mxu0 0.0
    %208 = vmatprep.subr.mxu0 0.0
    %209 = vmatpush1.msra.mxu0 0.0
    %210 = vmatprep.subr.mxu0 0.0
    %211 = vmatpush1.msra.mxu0 0.0
    %212 = vmatprep.subr.mxu0 0.0
    %213 = vmatpush1.msra.mxu0 0.0
    %214 = vmatprep.subr.mxu0 0.0
    %215 = vmatpush1.msra.mxu0 0.0
    %216 = vmatprep.subr.mxu0 0.0
    %217 = vmatpush1.msra.mxu0 0.0
    %218 = vmatprep.subr.mxu0 0.0
    %219 = vmatpush1.msra.mxu0 0.0
    %220 = vmatprep.subr.mxu0 0.0
    %221 = vmatpush1.msra.mxu0 0.0
    %222 = vmatprep.subr.mxu0 0.0
    %223 = vmatpush1.msra.mxu0 0.0
    %224 = vmatprep.mubr.f32.mxu0 0.0
    %225 = vmatmul.mubr.f32.gmra.mrb[0].mxu0 %v158
    %v226 = vpop.f32.mrb[0].mxu0
    %v227 = vadd.f32 0.0, %v226
    %v228 = vpop.f32.mrb[0].mxu0
    %229 = vdwg.mxu0
    %v231 = vsel %vm156, %v150, 0
    %233 = vmatprep.subr.mxu0 0.0
    %234 = vmatpush1.msra.mxu0 %v152
    %235 = vmatprep.subr.mxu0 0.0
    %236 = vmatpush1.msra.mxu0 %v153
    %237 = vmatprep.subr.mxu0 0.0
    %238 = vmatpush1.msra.mxu0 0.0
    %239 = vmatprep.subr.mxu0 0.0
    %240 = vmatpush1.msra.mxu0 0.0
    %241 = vmatprep.subr.mxu0 0.0
    %242 = vmatpush1.msra.mxu0 0.0
    %243 = vmatprep.subr.mxu0 0.0
    %244 = vmatpush1.msra.mxu0 0.0
    %245 = vmatprep.subr.mxu0 0.0
    %246 = vmatpush1.msra.mxu0 0.0
    %247 = vmatprep.subr.mxu0 0.0
    %248 = vmatpush1.msra.mxu0 0.0
    %249 = vmatprep.subr.mxu0 0.0
    %250 = vmatpush1.msra.mxu0 0.0
    %251 = vmatprep.subr.mxu0 0.0
    %252 = vmatpush1.msra.mxu0 0.0
    %253 = vmatprep.subr.mxu0 0.0
    %254 = vmatpush1.msra.mxu0 0.0
    %255 = vmatprep.subr.mxu0 0.0
    %256 = vmatpush1.msra.mxu0 0.0
    %257 = vmatprep.subr.mxu0 0.0
    %258 = vmatpush1.msra.mxu0 0.0
    %259 = vmatprep.subr.mxu0 0.0
    %260 = vmatpush1.msra.mxu0 0.0
    %261 = vmatprep.subr.mxu0 0.0
    %262 = vmatpush1.msra.mxu0 0.0
    %263 = vmatprep.subr.mxu0 0.0
    %264 = vmatpush1.msra.mxu0 0.0
    %265 = vmatprep.subr.mxu0 0.0
    %266 = vmatpush1.msra.mxu0 0.0
    %267 = vmatprep.subr.mxu0 0.0
    %268 = vmatpush1.msra.mxu0 0.0
    %269 = vmatprep.subr.mxu0 0.0
    %270 = vmatpush1.msra.mxu0 0.0
    %271 = vmatprep.subr.mxu0 0.0
    %272 = vmatpush1.msra.mxu0 0.0
    %273 = vmatprep.subr.mxu0 0.0
    %274 = vmatpush1.msra.mxu0 0.0
    %275 = vmatprep.subr.mxu0 0.0
    %276 = vmatpush1.msra.mxu0 0.0
    %277 = vmatprep.subr.mxu0 0.0
    %278 = vmatpush1.msra.mxu0 0.0
    %279 = vmatprep.subr.mxu0 0.0
    %280 = vmatpush1.msra.mxu0 0.0
    %281 = vmatprep.subr.mxu0 0.0
    %282 = vmatpush1.msra.mxu0 0.0
    %283 = vmatprep.subr.mxu0 0.0
    %284 = vmatpush1.msra.mxu0 0.0
    %285 = vmatprep.subr.mxu0 0.0
    %286 = vmatpush1.msra.mxu0 0.0
    %287 = vmatprep.subr.mxu0 0.0
    %288 = vmatpush1.msra.mxu0 0.0
    %289 = vmatprep.subr.mxu0 0.0
    %290 = vmatpush1.msra.mxu0 0.0
    %291 = vmatprep.subr.mxu0 0.0
    %292 = vmatpush1.msra.mxu0 0.0
    %293 = vmatprep.subr.mxu0 0.0
    %294 = vmatpush1.msra.mxu0 0.0
    %295 = vmatprep.subr.mxu0 0.0
    %296 = vmatpush1.msra.mxu0 0.0
    %297 = vmatprep.mubr.f32.mxu0 0.0
    %298 = vmatmul.mubr.f32.gmra.mrb[0].mxu0 %v231
    %v299 = vpop.f32.mrb[0].mxu0
    %v300 = vadd.f32 %v227, %v299
    %v301 = vpop.f32.mrb[0].mxu0
    %302 = vdwg.mxu0
    %v303 = vld [vmem:[%s5] sm:$0x1]
    %v304 = vadd.f32 %v300, %v303
    %v305 = vmax.f32 %v304, 0.0
    %v306 = vld [vmem:[#allocation11] sm:$0xff]
    %v307 = vld [vmem:[#allocation11 + $0x8] sm:$0xff]
    %v308 = vld [vmem:[#allocation11 + $0x10] sm:$0xff]
    %v309 = vld [vmem:[#allocation11 + $0x18] sm:$0xff]
    %v310 = vld [vmem:[#allocation13] sm:$0x1]
    %vm311 = vcmask 261120
    %v313 = vsel %vm311, %v305, 0
    %315 = vmatprep.subr.mxu0 0.0
    %316 = vmatpush1.msra.mxu0 %v306
    %317 = vmatprep.subr.mxu0 0.0
    %318 = vmatpush1.msra.mxu0 %v307
    %319 = vmatprep.subr.mxu0 0.0
    %320 = vmatpush1.msra.mxu0 %v308
    %321 = vmatprep.subr.mxu0 0.0
    %322 = vmatpush1.msra.mxu0 %v309
    %323 = vmatprep.subr.mxu0 0.0
    %324 = vmatpush1.msra.mxu0 0.0
    %325 = vmatprep.subr.mxu0 0.0
    %326 = vmatpush1.msra.mxu0 0.0
    %327 = vmatprep.subr.mxu0 0.0
    %328 = vmatpush1.msra.mxu0 0.0
    %329 = vmatprep.subr.mxu0 0.0
    %330 = vmatpush1.msra.mxu0 0.0
    %331 = vmatprep.subr.mxu0 0.0
    %332 = vmatpush1.msra.mxu0 0.0
    %333 = vmatprep.subr.mxu0 0.0
    %334 = vmatpush1.msra.mxu0 0.0
    %335 = vmatprep.subr.mxu0 0.0
    %336 = vmatpush1.msra.mxu0 0.0
    %337 = vmatprep.subr.mxu0 0.0
    %338 = vmatpush1.msra.mxu0 0.0
    %339 = vmatprep.subr.mxu0 0.0
    %340 = vmatpush1.msra.mxu0 0.0
    %341 = vmatprep.subr.mxu0 0.0
    %342 = vmatpush1.msra.mxu0 0.0
    %343 = vmatprep.subr.mxu0 0.0
    %344 = vmatpush1.msra.mxu0 0.0
    %345 = vmatprep.subr.mxu0 0.0
    %346 = vmatpush1.msra.mxu0 0.0
    %347 = vmatprep.subr.mxu0 0.0
    %348 = vmatpush1.msra.mxu0 0.0
    %349 = vmatprep.subr.mxu0 0.0
    %350 = vmatpush1.msra.mxu0 0.0
    %351 = vmatprep.subr.mxu0 0.0
    %352 = vmatpush1.msra.mxu0 0.0
    %353 = vmatprep.subr.mxu0 0.0
    %354 = vmatpush1.msra.mxu0 0.0
    %355 = vmatprep.subr.mxu0 0.0
    %356 = vmatpush1.msra.mxu0 0.0
    %357 = vmatprep.subr.mxu0 0.0
    %358 = vmatpush1.msra.mxu0 0.0
    %359 = vmatprep.subr.mxu0 0.0
    %360 = vmatpush1.msra.mxu0 0.0
    %361 = vmatprep.subr.mxu0 0.0
    %362 = vmatpush1.msra.mxu0 0.0
    %363 = vmatprep.subr.mxu0 0.0
    %364 = vmatpush1.msra.mxu0 0.0
    %365 = vmatprep.subr.mxu0 0.0
    %366 = vmatpush1.msra.mxu0 0.0
    %367 = vmatprep.subr.mxu0 0.0
    %368 = vmatpush1.msra.mxu0 0.0
    %369 = vmatprep.subr.mxu0 0.0
    %370 = vmatpush1.msra.mxu0 0.0
    %371 = vmatprep.subr.mxu0 0.0
    %372 = vmatpush1.msra.mxu0 0.0
    %373 = vmatprep.subr.mxu0 0.0
    %374 = vmatpush1.msra.mxu0 0.0
    %375 = vmatprep.subr.mxu0 0.0
    %376 = vmatpush1.msra.mxu0 0.0
    %377 = vmatprep.subr.mxu0 0.0
    %378 = vmatpush1.msra.mxu0 0.0
    %379 = vmatprep.mubr.f32.mxu0 0.0
    %380 = vmatmul.mubr.f32.gmra.mrb[0].mxu0 %v313
    %v381 = vpop.f32.mrb[0].mxu0
    %v382 = vadd.f32 %v310, %v381
    %v383 = vpop.f32.mrb[0].mxu0
    %384 = vdwg.mxu0
    %v385 = vmax.f32 %v382, 0.0
    %v386 = vld [vmem:[%s8] sm:$0xff]
    %v387 = vld [vmem:[%s8 + $0x8] sm:$0xff]
    %v388 = vld [vmem:[%s8 + $0x10] sm:$0xff]
    %v389 = vld [vmem:[%s8 + $0x18] sm:$0xff]
    %v390 = vld [vmem:[%s9] sm:$0x1]
    %v392 = vsel %vm311, %v385, 0
    %394 = vmatprep.subr.mxu0 0.0
    %395 = vmatpush1.msra.mxu0 %v386
    %396 = vmatprep.subr.mxu0 0.0
    %397 = vmatpush1.msra.mxu0 %v387
    %398 = vmatprep.subr.mxu0 0.0
    %399 = vmatpush1.msra.mxu0 %v388
    %400 = vmatprep.subr.mxu0 0.0
    %401 = vmatpush1.msra.mxu0 %v389
    %402 = vmatprep.subr.mxu0 0.0
    %403 = vmatpush1.msra.mxu0 0.0
    %404 = vmatprep.subr.mxu0 0.0
    %405 = vmatpush1.msra.mxu0 0.0
    %406 = vmatprep.subr.mxu0 0.0
    %407 = vmatpush1.msra.mxu0 0.0
    %408 = vmatprep.subr.mxu0 0.0
    %409 = vmatpush1.msra.mxu0 0.0
    %410 = vmatprep.subr.mxu0 0.0
    %411 = vmatpush1.msra.mxu0 0.0
    %412 = vmatprep.subr.mxu0 0.0
    %413 = vmatpush1.msra.mxu0 0.0
    %414 = vmatprep.subr.mxu0 0.0
    %415 = vmatpush1.msra.mxu0 0.0
    %416 = vmatprep.subr.mxu0 0.0
    %417 = vmatpush1.msra.mxu0 0.0
    %418 = vmatprep.subr.mxu0 0.0
    %419 = vmatpush1.msra.mxu0 0.0
    %420 = vmatprep.subr.mxu0 0.0
    %421 = vmatpush1.msra.mxu0 0.0
    %422 = vmatprep.subr.mxu0 0.0
    %423 = vmatpush1.msra.mxu0 0.0
    %424 = vmatprep.subr.mxu0 0.0
    %425 = vmatpush1.msra.mxu0 0.0
    %426 = vmatprep.subr.mxu0 0.0
    %427 = vmatpush1.msra.mxu0 0.0
    %428 = vmatprep.subr.mxu0 0.0
    %429 = vmatpush1.msra.mxu0 0.0
    %430 = vmatprep.subr.mxu0 0.0
    %431 = vmatpush1.msra.mxu0 0.0
    %432 = vmatprep.subr.mxu0 0.0
    %433 = vmatpush1.msra.mxu0 0.0
    %434 = vmatprep.subr.mxu0 0.0
    %435 = vmatpush1.msra.mxu0 0.0
    %436 = vmatprep.subr.mxu0 0.0
    %437 = vmatpush1.msra.mxu0 0.0
    %438 = vmatprep.subr.mxu0 0.0
    %439 = vmatpush1.msra.mxu0 0.0
    %440 = vmatprep.subr.mxu0 0.0
    %441 = vmatpush1.msra.mxu0 0.0
    %442 = vmatprep.subr.mxu0 0.0
    %443 = vmatpush1.msra.mxu0 0.0
    %444 = vmatprep.subr.mxu0 0.0
    %445 = vmatpush1.msra.mxu0 0.0
    %446 = vmatprep.subr.mxu0 0.0
    %447 = vmatpush1.msra.mxu0 0.0
    %448 = vmatprep.subr.mxu0 0.0
    %449 = vmatpush1.msra.mxu0 0.0
    %450 = vmatprep.subr.mxu0 0.0
    %451 = vmatpush1.msra.mxu0 0.0
    %452 = vmatprep.subr.mxu0 0.0
    %453 = vmatpush1.msra.mxu0 0.0
    %454 = vmatprep.subr.mxu0 0.0
    %455 = vmatpush1.msra.mxu0 0.0
    %456 = vmatprep.subr.mxu0 0.0
    %457 = vmatpush1.msra.mxu0 0.0
    %458 = vmatprep.mubr.f32.mxu0 0.0
    %459 = vmatmul.mubr.f32.gmra.mrb[0].mxu0 %v392
    %v460 = vpop.f32.mrb[0].mxu0
    %v461 = vadd.f32 %v390, %v460
    %v462 = vpop.f32.mrb[0].mxu0
    %463 = vdwg.mxu0
    %v464 = vmax.f32 %v461, 0.0
    %v465 = vld [vmem:[#allocation14] sm:$0xff]
    %v466 = vld [vmem:[#allocation14 + $0x8] sm:$0xff]
    %v467 = vld [vmem:[#allocation14 + $0x10] sm:$0xff]
    %v468 = vld [vmem:[#allocation14 + $0x18] sm:$0xff]
    %v469 = vld [vmem:[%s11] sm:$0x1]
    %v471 = vsel %vm311, %v464, 0
    %473 = vmatprep.subr.mxu0 0.0
    %474 = vmatpush1.msra.mxu0 %v465
    %475 = vmatprep.subr.mxu0 0.0
    %476 = vmatpush1.msra.mxu0 %v466
    %477 = vmatprep.subr.mxu0 0.0
    %478 = vmatpush1.msra.mxu0 %v467
    %479 = vmatprep.subr.mxu0 0.0
    %480 = vmatpush1.msra.mxu0 %v468
    %481 = vmatprep.subr.mxu0 0.0
    %482 = vmatpush1.msra.mxu0 0.0
    %483 = vmatprep.subr.mxu0 0.0
    %484 = vmatpush1.msra.mxu0 0.0
    %485 = vmatprep.subr.mxu0 0.0
    %486 = vmatpush1.msra.mxu0 0.0
    %487 = vmatprep.subr.mxu0 0.0
    %488 = vmatpush1.msra.mxu0 0.0
    %489 = vmatprep.subr.mxu0 0.0
    %490 = vmatpush1.msra.mxu0 0.0
    %491 = vmatprep.subr.mxu0 0.0
    %492 = vmatpush1.msra.mxu0 0.0
    %493 = vmatprep.subr.mxu0 0.0
    %494 = vmatpush1.msra.mxu0 0.0
    %495 = vmatprep.subr.mxu0 0.0
    %496 = vmatpush1.msra.mxu0 0.0
    %497 = vmatprep.subr.mxu0 0.0
    %498 = vmatpush1.msra.mxu0 0.0
    %499 = vmatprep.subr.mxu0 0.0
    %500 = vmatpush1.msra.mxu0 0.0
    %501 = vmatprep.subr.mxu0 0.0
    %502 = vmatpush1.msra.mxu0 0.0
    %503 = vmatprep.subr.mxu0 0.0
    %504 = vmatpush1.msra.mxu0 0.0
    %505 = vmatprep.subr.mxu0 0.0
    %506 = vmatpush1.msra.mxu0 0.0
    %507 = vmatprep.subr.mxu0 0.0
    %508 = vmatpush1.msra.mxu0 0.0
    %509 = vmatprep.subr.mxu0 0.0
    %510 = vmatpush1.msra.mxu0 0.0
    %511 = vmatprep.subr.mxu0 0.0
    %512 = vmatpush1.msra.mxu0 0.0
    %513 = vmatprep.subr.mxu0 0.0
    %514 = vmatpush1.msra.mxu0 0.0
    %515 = vmatprep.subr.mxu0 0.0
    %516 = vmatpush1.msra.mxu0 0.0
    %517 = vmatprep.subr.mxu0 0.0
    %518 = vmatpush1.msra.mxu0 0.0
    %519 = vmatprep.subr.mxu0 0.0
    %520 = vmatpush1.msra.mxu0 0.0
    %521 = vmatprep.subr.mxu0 0.0
    %522 = vmatpush1.msra.mxu0 0.0
    %523 = vmatprep.subr.mxu0 0.0
    %524 = vmatpush1.msra.mxu0 0.0
    %525 = vmatprep.subr.mxu0 0.0
    %526 = vmatpush1.msra.mxu0 0.0
    %527 = vmatprep.subr.mxu0 0.0
    %528 = vmatpush1.msra.mxu0 0.0
    %529 = vmatprep.subr.mxu0 0.0
    %530 = vmatpush1.msra.mxu0 0.0
    %531 = vmatprep.subr.mxu0 0.0
    %532 = vmatpush1.msra.mxu0 0.0
    %533 = vmatprep.subr.mxu0 0.0
    %534 = vmatpush1.msra.mxu0 0.0
    %535 = vmatprep.subr.mxu0 0.0
    %536 = vmatpush1.msra.mxu0 0.0
    %537 = vmatprep.mubr.f32.mxu0 0.0
    %538 = vmatmul.mubr.f32.gmra.mrb[0].mxu0 %v471
    %v539 = vpop.f32.mrb[0].mxu0
    %v540 = vadd.f32 %v469, %v539
    %v541 = vpop.f32.mrb[0].mxu0
    %542 = vdwg.mxu0
    %v543 = vld [vmem:[#allocation16] sm:$0xff]
    %v544 = vld [vmem:[#allocation16 + $0x8] sm:$0xff]
    %v545 = vld [vmem:[#allocation16 + $0x10] sm:$0xff]
    %v546 = vld [vmem:[#allocation16 + $0x18] sm:$0xff]
    %v547 = vld [vmem:[%s13] sm:$0x1]
    %v549 = vsel %vm311, %v540, 0
    %551 = vmatprep.subr.mxu0 0.0
    %552 = vmatpush1.msra.mxu0 %v543
    %553 = vmatprep.subr.mxu0 0.0
    %554 = vmatpush1.msra.mxu0 %v544
    %555 = vmatprep.subr.mxu0 0.0
    %556 = vmatpush1.msra.mxu0 %v545
    %557 = vmatprep.subr.mxu0 0.0
    %558 = vmatpush1.msra.mxu0 %v546
    %559 = vmatprep.subr.mxu0 0.0
    %560 = vmatpush1.msra.mxu0 0.0
    %561 = vmatprep.subr.mxu0 0.0
    %562 = vmatpush1.msra.mxu0 0.0
    %563 = vmatprep.subr.mxu0 0.0
    %564 = vmatpush1.msra.mxu0 0.0
    %565 = vmatprep.subr.mxu0 0.0
    %566 = vmatpush1.msra.mxu0 0.0
    %567 = vmatprep.subr.mxu0 0.0
    %568 = vmatpush1.msra.mxu0 0.0
    %569 = vmatprep.subr.mxu0 0.0
    %570 = vmatpush1.msra.mxu0 0.0
    %571 = vmatprep.subr.mxu0 0.0
    %572 = vmatpush1.msra.mxu0 0.0
    %573 = vmatprep.subr.mxu0 0.0
    %574 = vmatpush1.msra.mxu0 0.0
    %575 = vmatprep.subr.mxu0 0.0
    %576 = vmatpush1.msra.mxu0 0.0
    %577 = vmatprep.subr.mxu0 0.0
    %578 = vmatpush1.msra.mxu0 0.0
    %579 = vmatprep.subr.mxu0 0.0
    %580 = vmatpush1.msra.mxu0 0.0
    %581 = vmatprep.subr.mxu0 0.0
    %582 = vmatpush1.msra.mxu0 0.0
    %583 = vmatprep.subr.mxu0 0.0
    %584 = vmatpush1.msra.mxu0 0.0
    %585 = vmatprep.subr.mxu0 0.0
    %586 = vmatpush1.msra.mxu0 0.0
    %587 = vmatprep.subr.mxu0 0.0
    %588 = vmatpush1.msra.mxu0 0.0
    %589 = vmatprep.subr.mxu0 0.0
    %590 = vmatpush1.msra.mxu0 0.0
    %591 = vmatprep.subr.mxu0 0.0
    %592 = vmatpush1.msra.mxu0 0.0
    %593 = vmatprep.subr.mxu0 0.0
    %594 = vmatpush1.msra.mxu0 0.0
    %595 = vmatprep.subr.mxu0 0.0
    %596 = vmatpush1.msra.mxu0 0.0
    %597 = vmatprep.subr.mxu0 0.0
    %598 = vmatpush1.msra.mxu0 0.0
    %599 = vmatprep.subr.mxu0 0.0
    %600 = vmatpush1.msra.mxu0 0.0
    %601 = vmatprep.subr.mxu0 0.0
    %602 = vmatpush1.msra.mxu0 0.0
    %603 = vmatprep.subr.mxu0 0.0
    %604 = vmatpush1.msra.mxu0 0.0
    %605 = vmatprep.subr.mxu0 0.0
    %606 = vmatpush1.msra.mxu0 0.0
    %607 = vmatprep.subr.mxu0 0.0
    %608 = vmatpush1.msra.mxu0 0.0
    %609 = vmatprep.subr.mxu0 0.0
    %610 = vmatpush1.msra.mxu0 0.0
    %611 = vmatprep.subr.mxu0 0.0
    %612 = vmatpush1.msra.mxu0 0.0
    %613 = vmatprep.subr.mxu0 0.0
    %614 = vmatpush1.msra.mxu0 0.0
    %615 = vmatprep.mubr.f32.mxu0 0.0
    %616 = vmatmul.mubr.f32.gmra.mrb[0].mxu0 %v549
    %v617 = vpop.f32.mrb[0].mxu0
    %v618 = vadd.f32 %v547, %v617
    %v619 = vpop.f32.mrb[0].mxu0
    %620 = vdwg.mxu0
    %vm621 = vcmask 253952
    %622 = vst.msk [vmem:[#allocation17] sm:$0x1] %vm621, %v618
    %v623 = vld [vmem:[%s14] sm:$0x1]
    %v624 = vmul.f32 %v540, %v623
    %v625 = vsel %vm621, %v624, 0.0
    %626 = vadd.xlane.f32.xlu0 %v625
    %v627 = vpop.xlane.xlu0 %626
    %s628 = sld [smem:[#allocation4]]
    %v629 = vstv %s628
    %v630 = vadd.f32 %v627, %v629
    %vm631 = vcmask 0
    %632 = vst.msk [vmem:[#allocation18] sm:$0x1] %vm631, %v630
    // Predicated region
    $region90: #{tpu_custom_call.1} parent=1 // pred_check
      _
    $region91: #{tpu_custom_call.1} parent=1 // pred_check_branch
      %634 = sbr.rel (0) target = $region93
    $region92: #{tpu_custom_call.1} parent=1 // pred_region
      %s636 = ssub.s32 16, 16
      %637 = vsyncadd [#allocation7], %s636
      %s639 = sshll.u32 [#allocation17], 4
      %s640 = int_to_ptr.vmem [resolvable:$true] %s639
      %642 = dma.vmem_to_hbm [thread:$0]  %s640, 16, %s16, [#allocation7]
    $region93: #{tpu_custom_call.1} parent=1 // pred_fallthru
      _
    // Predicated region
    $region94: #{tpu_custom_call.1} parent=1 // pred_check
      _
    $region95: #{tpu_custom_call.1} parent=1 // pred_check_branch
      %644 = sbr.rel (0) target = $region97
    $region96: #{tpu_custom_call.1} parent=1 // pred_region
      %s646 = ssub.s32 16, 16
      %647 = vsyncadd [#allocation19], %s646
      %s649 = sshll.u32 [#allocation18], 4
      %s650 = int_to_ptr.vmem [resolvable:$true] %s649
      %652 = dma.vmem_to_hbm [thread:$0]  %s650, 16, %s17, [#allocation19]
    $region97: #{tpu_custom_call.1} parent=1 // pred_fallthru
      _
    // Predicated region
    $region98: #{tpu_custom_call.1} parent=1 // pred_check
      _
    $region99: #{tpu_custom_call.1} parent=1 // pred_check_branch
      %654 = sbr.rel (0) target = $region101
    $region100: #{tpu_custom_call.1} parent=1 // pred_region
      %655 = dma.done [#allocation7], 16
    $region101: #{tpu_custom_call.1} parent=1 // pred_fallthru
      _
    // Predicated region
    $region102: #{tpu_custom_call.1} parent=1 // pred_check
      _
    $region103: #{tpu_custom_call.1} parent=1 // pred_check_branch
      %657 = sbr.rel (0) target = $region105
    $region104: #{tpu_custom_call.1} parent=1 // pred_region
      %658 = dma.done [#allocation19], 16
    $region105: #{tpu_custom_call.1} parent=1 // pred_fallthru
      _
    %659 = vsyncpa [#allocation6], 1
    %660 = vsyncpa [#allocation9], 1
    %661 = vsyncpa [#allocation12], 1
    %662 = vsyncpa [#allocation15], 1
    %663 = vsyncpa [#allocation7], 1
    %664 = vsyncpa [#allocation19], 1

</llo_original>
